<compile_context>
chip_gen: v7x
topology: tpu7x:2x2x1
jax: 0.10.0
libtpu: 0.0.40
codegen_flags: <defaults>
</compile_context>

<pallas_src>
import functools

import jax
import jax.numpy as jnp
from jax.experimental import pallas as pl
from jax.experimental.pallas import tpu as pltpu

BN_EPS = 1e-5
FPAD = 128                                 # lane-dense feature padding
RELU_FLAGS = (True, False, True, False)    # encoder, to_latent, decoder, to_output
NORM_TRAINING = True                       # training-mode BN => biases cancel


def autoencoder_kernel(x_ref, w_ref, gb_ref, loss_ref, *, in_dim):
    """Whole-network forward (4 x [Linear -> BN (-> ReLU)]) + sum-MSE loss.

    x_ref  : (N, 128)      f32  VMEM   input, zero-padded lanes
    w_ref  : (4, 128, 128) bf16 VMEM   pre-transposed, zero-padded weights
    gb_ref : (8, 128)      f32  VMEM   rows g0,b0,g1,b1,g2,b2,g3,b3
    loss_ref: (1, 1)       f32  SMEM   scalar loss
    """
    assert NORM_TRAINING, "bias-free Linear is only valid with training-mode BN"

    x = x_ref[...]                                   # f32 (N,128)
    h = x
    for l, relu in enumerate(RELU_FLAGS):
        # Linear (bias omitted; cancelled by training-mode BN mean subtraction).
        # bf16 x bf16 -> f32 accumulate on the MXU.
        h = jnp.dot(h.astype(jnp.bfloat16), w_ref[l],
                    preferred_element_type=jnp.float32)

        # Training-mode BatchNorm1d, centered variance (numerically robust),
        # fused into a single scale/offset on the centered activations.
        mean = jnp.mean(h, axis=0, keepdims=True)           # (1,128)
        d = h - mean
        var = jnp.mean(d * d, axis=0, keepdims=True)         # biased batch var
        gamma = gb_ref[2 * l: 2 * l + 1, :]                   # (1,128) static slice
        beta = gb_ref[2 * l + 1: 2 * l + 2, :]                # (1,128) static slice
        scale = jax.lax.rsqrt(var + BN_EPS) * gamma           # rsqrt -> EUP
        h = d * scale + beta

        if relu:
            h = jnp.maximum(h, 0.0)

    # loss = sum((x_recon - x)^2) / in_dim ; padded lanes contribute exactly 0.
    diff = h - x
    sq = diff * diff
    col = jnp.sum(sq, axis=0, keepdims=True)   # sublane reduce first -> (1,128)
    total = jnp.sum(col)                       # single lane reduce -> scalar
    loss_ref[0, 0] = total * (1.0 / in_dim)


def autoencoder_forward(x_padded, w_packed, gb_packed, in_dim):
    n = x_padded.shape[0]
    n_layers = w_packed.shape[0]
    # Advisory cost for XLA's scheduler around this latency-bound custom call.
    flops = 2 * n * FPAD * FPAD * n_layers + 10 * n * FPAD * n_layers
    bytes_accessed = (x_padded.size * 4 + w_packed.size * 2
                      + gb_packed.size * 4 + 4)
    transcendentals = n_layers * FPAD      # rsqrt on one (1,128) row per layer

    kernel = functools.partial(autoencoder_kernel, in_dim=in_dim)
    loss = pl.pallas_call(
        kernel,
        out_shape=jax.ShapeDtypeStruct((1, 1), jnp.float32),
        # Tiny problem: whole arrays live in VMEM, single grid point.
        in_specs=[pl.BlockSpec(memory_space=pltpu.MemorySpace.VMEM)] * 3,
        out_specs=pl.BlockSpec(memory_space=pltpu.MemorySpace.SMEM),
        cost_estimate=pl.CostEstimate(flops=flops,
                                      transcendentals=transcendentals,
                                      bytes_accessed=bytes_accessed),
    )(x_padded, w_packed, gb_packed)
    return loss[0, 0]


def init_params(key, layer_dims):
    """PyTorch-style init (U(-1/sqrt(fan_in), 1/sqrt(fan_in))).  Biases are
    generated but only used by the f32 reference (the kernel drops them; they
    cancel under training-mode BN).  Random gamma/beta exercise the full
    affine path (a fresh nn.BatchNorm1d would have gamma=1, beta=0)."""
    params = []
    for fan_in, fan_out in layer_dims:
        key, kw, kb, kg, kbe = jax.random.split(key, 5)
        bound = float(fan_in) ** -0.5
        w = jax.random.uniform(kw, (fan_in, fan_out), jnp.float32, -bound, bound)
        b = jax.random.uniform(kb, (fan_out,), jnp.float32, -bound, bound)
        gamma = jax.random.uniform(kg, (fan_out,), jnp.float32, 0.5, 1.5)
        beta = jax.random.uniform(kbe, (fan_out,), jnp.float32, -0.1, 0.1)
        params.append((w, b, gamma, beta))
    return params


def pack_params(params):
    """Pack weights (bf16) and gamma/beta (single dense f32 (2L,128) tile)."""
    n_layers = len(params)
    w_packed = jnp.zeros((n_layers, FPAD, FPAD), jnp.bfloat16)
    gb_packed = jnp.zeros((2 * n_layers, FPAD), jnp.float32)
    for l, (w, _b, g, be) in enumerate(params):
        fi, fo = w.shape
        w_packed = w_packed.at[l, :fi, :fo].set(w.astype(jnp.bfloat16))
        gb_packed = gb_packed.at[2 * l, :fo].set(g)
        gb_packed = gb_packed.at[2 * l + 1, :fo].set(be)
    return w_packed, gb_packed


def pad_features(x):
    n, f = x.shape
    # Batch rows must NOT be padded (would corrupt BN batch statistics).
    assert n % 8 == 0, "batch should be sublane-aligned and stay unpadded"
    return jnp.pad(x, ((0, 0), (0, FPAD - f)))


def autoencoder_reference_f32(x, params, in_dim):
    """Pure-JAX mirror of PyTorch AutoEncoder.forward (training-mode BN, f32,
    WITH the Linear biases — checks the bias-cancellation claim + overall)."""
    h = x
    for (w, b, g, be), relu in zip(params, RELU_FLAGS):
        h = h @ w + b
        mean = jnp.mean(h, axis=0, keepdims=True)
        var = jnp.mean((h - mean) ** 2, axis=0, keepdims=True)
        h = (h - mean) * jax.lax.rsqrt(var + BN_EPS) * g + be
        if relu:
            h = jnp.maximum(h, 0.0)
    diff = h - x
    return jnp.sum(diff * diff) / in_dim


def autoencoder_reference_bf16(x, params, in_dim):
    """Same math as the kernel (bf16 matmul inputs, f32 accumulate, no bias,
    centered BN) — tight numerical check of the kernel itself."""
    h = x
    for (w, _b, g, be), relu in zip(params, RELU_FLAGS):
        h = jnp.dot(h.astype(jnp.bfloat16), w.astype(jnp.bfloat16),
                    preferred_element_type=jnp.float32)
        mean = jnp.mean(h, axis=0, keepdims=True)
        d = h - mean
        var = jnp.mean(d * d, axis=0, keepdims=True)
        h = d * jax.lax.rsqrt(var + BN_EPS) * g + be
        if relu:
            h = jnp.maximum(h, 0.0)
    diff = h - x
    return jnp.sum(diff * diff) / in_dim


if __name__ == "__main__":
    in_dim, n_hidden, n_latent, batch = 32, 64, 16, 16
    layer_dims = [(in_dim, n_hidden),      # encoder
                  (n_hidden, n_latent),    # encoder_to_latent
                  (n_latent, n_hidden),    # decoder
                  (n_hidden, in_dim)]      # decoder_to_output

    key = jax.random.PRNGKey(0)
    key, kx = jax.random.split(key)
    x = jax.random.normal(kx, (batch, in_dim), jnp.float32)

    params = init_params(key, layer_dims)
    w_packed, gb_packed = pack_params(params)
    x_padded = pad_features(x)

    loss = autoencoder_forward(x_padded, w_packed, gb_packed, in_dim)
    loss = jax.block_until_ready(loss)

    ref_f32 = autoencoder_reference_f32(x, params, in_dim)
    ref_bf16 = autoencoder_reference_bf16(x, params, in_dim)

    assert jnp.isfinite(loss), loss
    # Tight check vs a reference that mirrors the kernel's bf16-weight math.
    assert jnp.allclose(loss, ref_bf16, atol=1e-3, rtol=5e-3), (loss, ref_bf16)
    # Looser check vs the full-precision, biased PyTorch-equivalent reference
    # (bf16 weights introduce ~0.3-1% relative drift through 4 layers).
    assert jnp.allclose(loss, ref_f32, atol=1e-2, rtol=5e-2), (loss, ref_f32)

    print("KERNEL_OK")
</pallas_src>

<mosaic_0001>
module attributes {stable_mosaic.version = 11 : i64} {
  func.func @autoencoder_kernel(%arg0: memref<16x128xf32, #tpu.memory_space<vmem>>, %arg1: memref<4x128x128xbf16, #tpu.memory_space<vmem>>, %arg2: memref<8x128xf32, #tpu.memory_space<vmem>>, %arg3: memref<1x1xf32, #tpu.memory_space<smem>>) attributes {dimension_semantics = [], scalar_prefetch = 0 : i64, scratch_operands = 0 : i64, tpu.core_type = #tpu.core_type<tc>} {
    %c0 = arith.constant 0 : index
    %c0_0 = arith.constant 0 : index
    %0 = vector.load %arg0[%c0, %c0_0] : memref<16x128xf32, #tpu.memory_space<vmem>>, vector<16x128xf32>
    %1 = arith.truncf %0 : vector<16x128xf32> to vector<16x128xbf16>
    %c0_1 = arith.constant 0 : index
    %c0_2 = arith.constant 0 : index
    %c0_3 = arith.constant 0 : index
    %2 = vector.load %arg1[%c0_1, %c0_2, %c0_3] : memref<4x128x128xbf16, #tpu.memory_space<vmem>>, vector<1x128x128xbf16>
    %3 = vector.shape_cast %2 : vector<1x128x128xbf16> to vector<128x128xbf16>
    %cst = arith.constant dense<0.000000e+00> : vector<16x128xf32>
    %4 = tpu.matmul %1, %3, %cst {dimension_numbers = #tpu.dot_dimension_numbers<[1], [0], [0], [1], [0, 0, 1, 1], [], []>} : vector<16x128xbf16>, vector<128x128xbf16>, vector<16x128xf32> -> vector<16x128xf32>
    %cst_4 = arith.constant dense<0.000000e+00> : vector<128xf32>
    %5 = vector.multi_reduction <add>, %4, %cst_4 [0] : vector<16x128xf32> to vector<128xf32>
    %6 = vector.shape_cast %5 : vector<128xf32> to vector<1x128xf32>
    %cst_5 = arith.constant 1.600000e+01 : f32
    %7 = vector.broadcast %cst_5 : f32 to vector<1x128xf32>
    %8 = arith.divf %6, %7 : vector<1x128xf32>
    %9 = vector.broadcast %8 : vector<1x128xf32> to vector<16x128xf32>
    %10 = arith.subf %4, %9 : vector<16x128xf32>
    %11 = arith.mulf %10, %10 : vector<16x128xf32>
    %cst_6 = arith.constant dense<0.000000e+00> : vector<128xf32>
    %12 = vector.multi_reduction <add>, %11, %cst_6 [0] : vector<16x128xf32> to vector<128xf32>
    %13 = vector.shape_cast %12 : vector<128xf32> to vector<1x128xf32>
    %cst_7 = arith.constant 1.600000e+01 : f32
    %14 = vector.broadcast %cst_7 : f32 to vector<1x128xf32>
    %15 = arith.divf %13, %14 : vector<1x128xf32>
    %c0_8 = arith.constant 0 : index
    %c0_9 = arith.constant 0 : index
    %16 = vector.load %arg2[%c0_8, %c0_9] : memref<8x128xf32, #tpu.memory_space<vmem>>, vector<1x128xf32>
    %c1 = arith.constant 1 : index
    %c0_10 = arith.constant 0 : index
    %17 = vector.load %arg2[%c1, %c0_10] : memref<8x128xf32, #tpu.memory_space<vmem>>, vector<1x128xf32>
    %cst_11 = arith.constant 9.99999974E-6 : f32
    %18 = vector.broadcast %cst_11 : f32 to vector<1x128xf32>
    %19 = arith.addf %15, %18 : vector<1x128xf32>
    %20 = math.rsqrt %19 : vector<1x128xf32>
    %21 = arith.mulf %20, %16 : vector<1x128xf32>
    %22 = vector.broadcast %21 : vector<1x128xf32> to vector<16x128xf32>
    %23 = arith.mulf %10, %22 : vector<16x128xf32>
    %24 = vector.broadcast %17 : vector<1x128xf32> to vector<16x128xf32>
    %25 = arith.addf %23, %24 : vector<16x128xf32>
    %cst_12 = arith.constant 0.000000e+00 : f32
    %26 = vector.broadcast %cst_12 : f32 to vector<16x128xf32>
    %27 = arith.maximumf %25, %26 : vector<16x128xf32>
    %28 = arith.truncf %27 : vector<16x128xf32> to vector<16x128xbf16>
    %c1_13 = arith.constant 1 : index
    %c0_14 = arith.constant 0 : index
    %c0_15 = arith.constant 0 : index
    %29 = vector.load %arg1[%c1_13, %c0_14, %c0_15] : memref<4x128x128xbf16, #tpu.memory_space<vmem>>, vector<1x128x128xbf16>
    %30 = vector.shape_cast %29 : vector<1x128x128xbf16> to vector<128x128xbf16>
    %cst_16 = arith.constant dense<0.000000e+00> : vector<16x128xf32>
    %31 = tpu.matmul %28, %30, %cst_16 {dimension_numbers = #tpu.dot_dimension_numbers<[1], [0], [0], [1], [0, 0, 1, 1], [], []>} : vector<16x128xbf16>, vector<128x128xbf16>, vector<16x128xf32> -> vector<16x128xf32>
    %cst_17 = arith.constant dense<0.000000e+00> : vector<128xf32>
    %32 = vector.multi_reduction <add>, %31, %cst_17 [0] : vector<16x128xf32> to vector<128xf32>
    %33 = vector.shape_cast %32 : vector<128xf32> to vector<1x128xf32>
    %cst_18 = arith.constant 1.600000e+01 : f32
    %34 = vector.broadcast %cst_18 : f32 to vector<1x128xf32>
    %35 = arith.divf %33, %34 : vector<1x128xf32>
    %36 = vector.broadcast %35 : vector<1x128xf32> to vector<16x128xf32>
    %37 = arith.subf %31, %36 : vector<16x128xf32>
    %38 = arith.mulf %37, %37 : vector<16x128xf32>
    %cst_19 = arith.constant dense<0.000000e+00> : vector<128xf32>
    %39 = vector.multi_reduction <add>, %38, %cst_19 [0] : vector<16x128xf32> to vector<128xf32>
    %40 = vector.shape_cast %39 : vector<128xf32> to vector<1x128xf32>
    %cst_20 = arith.constant 1.600000e+01 : f32
    %41 = vector.broadcast %cst_20 : f32 to vector<1x128xf32>
    %42 = arith.divf %40, %41 : vector<1x128xf32>
    %c2 = arith.constant 2 : index
    %c0_21 = arith.constant 0 : index
    %43 = vector.load %arg2[%c2, %c0_21] : memref<8x128xf32, #tpu.memory_space<vmem>>, vector<1x128xf32>
    %c3 = arith.constant 3 : index
    %c0_22 = arith.constant 0 : index
    %44 = vector.load %arg2[%c3, %c0_22] : memref<8x128xf32, #tpu.memory_space<vmem>>, vector<1x128xf32>
    %cst_23 = arith.constant 9.99999974E-6 : f32
    %45 = vector.broadcast %cst_23 : f32 to vector<1x128xf32>
    %46 = arith.addf %42, %45 : vector<1x128xf32>
    %47 = math.rsqrt %46 : vector<1x128xf32>
    %48 = arith.mulf %47, %43 : vector<1x128xf32>
    %49 = vector.broadcast %48 : vector<1x128xf32> to vector<16x128xf32>
    %50 = arith.mulf %37, %49 : vector<16x128xf32>
    %51 = vector.broadcast %44 : vector<1x128xf32> to vector<16x128xf32>
    %52 = arith.addf %50, %51 : vector<16x128xf32>
    %53 = arith.truncf %52 : vector<16x128xf32> to vector<16x128xbf16>
    %c2_24 = arith.constant 2 : index
    %c0_25 = arith.constant 0 : index
    %c0_26 = arith.constant 0 : index
    %54 = vector.load %arg1[%c2_24, %c0_25, %c0_26] : memref<4x128x128xbf16, #tpu.memory_space<vmem>>, vector<1x128x128xbf16>
    %55 = vector.shape_cast %54 : vector<1x128x128xbf16> to vector<128x128xbf16>
    %cst_27 = arith.constant dense<0.000000e+00> : vector<16x128xf32>
    %56 = tpu.matmul %53, %55, %cst_27 {dimension_numbers = #tpu.dot_dimension_numbers<[1], [0], [0], [1], [0, 0, 1, 1], [], []>} : vector<16x128xbf16>, vector<128x128xbf16>, vector<16x128xf32> -> vector<16x128xf32>
    %cst_28 = arith.constant dense<0.000000e+00> : vector<128xf32>
    %57 = vector.multi_reduction <add>, %56, %cst_28 [0] : vector<16x128xf32> to vector<128xf32>
    %58 = vector.shape_cast %57 : vector<128xf32> to vector<1x128xf32>
    %cst_29 = arith.constant 1.600000e+01 : f32
    %59 = vector.broadcast %cst_29 : f32 to vector<1x128xf32>
    %60 = arith.divf %58, %59 : vector<1x128xf32>
    %61 = vector.broadcast %60 : vector<1x128xf32> to vector<16x128xf32>
    %62 = arith.subf %56, %61 : vector<16x128xf32>
    %63 = arith.mulf %62, %62 : vector<16x128xf32>
    %cst_30 = arith.constant dense<0.000000e+00> : vector<128xf32>
    %64 = vector.multi_reduction <add>, %63, %cst_30 [0] : vector<16x128xf32> to vector<128xf32>
    %65 = vector.shape_cast %64 : vector<128xf32> to vector<1x128xf32>
    %cst_31 = arith.constant 1.600000e+01 : f32
    %66 = vector.broadcast %cst_31 : f32 to vector<1x128xf32>
    %67 = arith.divf %65, %66 : vector<1x128xf32>
    %c4 = arith.constant 4 : index
    %c0_32 = arith.constant 0 : index
    %68 = vector.load %arg2[%c4, %c0_32] : memref<8x128xf32, #tpu.memory_space<vmem>>, vector<1x128xf32>
    %c5 = arith.constant 5 : index
    %c0_33 = arith.constant 0 : index
    %69 = vector.load %arg2[%c5, %c0_33] : memref<8x128xf32, #tpu.memory_space<vmem>>, vector<1x128xf32>
    %cst_34 = arith.constant 9.99999974E-6 : f32
    %70 = vector.broadcast %cst_34 : f32 to vector<1x128xf32>
    %71 = arith.addf %67, %70 : vector<1x128xf32>
    %72 = math.rsqrt %71 : vector<1x128xf32>
    %73 = arith.mulf %72, %68 : vector<1x128xf32>
    %74 = vector.broadcast %73 : vector<1x128xf32> to vector<16x128xf32>
    %75 = arith.mulf %62, %74 : vector<16x128xf32>
    %76 = vector.broadcast %69 : vector<1x128xf32> to vector<16x128xf32>
    %77 = arith.addf %75, %76 : vector<16x128xf32>
    %cst_35 = arith.constant 0.000000e+00 : f32
    %78 = vector.broadcast %cst_35 : f32 to vector<16x128xf32>
    %79 = arith.maximumf %77, %78 : vector<16x128xf32>
    %80 = arith.truncf %79 : vector<16x128xf32> to vector<16x128xbf16>
    %c3_36 = arith.constant 3 : index
    %c0_37 = arith.constant 0 : index
    %c0_38 = arith.constant 0 : index
    %81 = vector.load %arg1[%c3_36, %c0_37, %c0_38] : memref<4x128x128xbf16, #tpu.memory_space<vmem>>, vector<1x128x128xbf16>
    %82 = vector.shape_cast %81 : vector<1x128x128xbf16> to vector<128x128xbf16>
    %cst_39 = arith.constant dense<0.000000e+00> : vector<16x128xf32>
    %83 = tpu.matmul %80, %82, %cst_39 {dimension_numbers = #tpu.dot_dimension_numbers<[1], [0], [0], [1], [0, 0, 1, 1], [], []>} : vector<16x128xbf16>, vector<128x128xbf16>, vector<16x128xf32> -> vector<16x128xf32>
    %cst_40 = arith.constant dense<0.000000e+00> : vector<128xf32>
    %84 = vector.multi_reduction <add>, %83, %cst_40 [0] : vector<16x128xf32> to vector<128xf32>
    %85 = vector.shape_cast %84 : vector<128xf32> to vector<1x128xf32>
    %cst_41 = arith.constant 1.600000e+01 : f32
    %86 = vector.broadcast %cst_41 : f32 to vector<1x128xf32>
    %87 = arith.divf %85, %86 : vector<1x128xf32>
    %88 = vector.broadcast %87 : vector<1x128xf32> to vector<16x128xf32>
    %89 = arith.subf %83, %88 : vector<16x128xf32>
    %90 = arith.mulf %89, %89 : vector<16x128xf32>
    %cst_42 = arith.constant dense<0.000000e+00> : vector<128xf32>
    %91 = vector.multi_reduction <add>, %90, %cst_42 [0] : vector<16x128xf32> to vector<128xf32>
    %92 = vector.shape_cast %91 : vector<128xf32> to vector<1x128xf32>
    %cst_43 = arith.constant 1.600000e+01 : f32
    %93 = vector.broadcast %cst_43 : f32 to vector<1x128xf32>
    %94 = arith.divf %92, %93 : vector<1x128xf32>
    %c6 = arith.constant 6 : index
    %c0_44 = arith.constant 0 : index
    %95 = vector.load %arg2[%c6, %c0_44] : memref<8x128xf32, #tpu.memory_space<vmem>>, vector<1x128xf32>
    %c7 = arith.constant 7 : index
    %c0_45 = arith.constant 0 : index
    %96 = vector.load %arg2[%c7, %c0_45] : memref<8x128xf32, #tpu.memory_space<vmem>>, vector<1x128xf32>
    %cst_46 = arith.constant 9.99999974E-6 : f32
    %97 = vector.broadcast %cst_46 : f32 to vector<1x128xf32>
    %98 = arith.addf %94, %97 : vector<1x128xf32>
    %99 = math.rsqrt %98 : vector<1x128xf32>
    %100 = arith.mulf %99, %95 : vector<1x128xf32>
    %101 = vector.broadcast %100 : vector<1x128xf32> to vector<16x128xf32>
    %102 = arith.mulf %89, %101 : vector<16x128xf32>
    %103 = vector.broadcast %96 : vector<1x128xf32> to vector<16x128xf32>
    %104 = arith.addf %102, %103 : vector<16x128xf32>
    %105 = arith.subf %104, %0 : vector<16x128xf32>
    %106 = arith.mulf %105, %105 : vector<16x128xf32>
    %cst_47 = arith.constant dense<0.000000e+00> : vector<128xf32>
    %107 = vector.multi_reduction <add>, %106, %cst_47 [0] : vector<16x128xf32> to vector<128xf32>
    %108 = vector.shape_cast %107 : vector<128xf32> to vector<1x128xf32>
    %109 = vector.shape_cast %108 : vector<1x128xf32> to vector<1x1x128xf32>
    %cst_48 = arith.constant dense<0.000000e+00> : vector<1xf32>
    %110 = vector.multi_reduction <add>, %109, %cst_48 [1, 2] : vector<1x1x128xf32> to vector<1xf32>
    %111 = vector.shape_cast %110 : vector<1xf32> to vector<1x1x1xf32>
    %112 = vector.extract %111[0, 0, 0] : f32 from vector<1x1x1xf32>
    %cst_49 = arith.constant 3.125000e-02 : f32
    %113 = arith.mulf %112, %cst_49 : f32
    %c0_50 = arith.constant 0 : index
    %c0_51 = arith.constant 0 : index
    %114 = memref.load %arg3[%c0_50, %c0_51] : memref<1x1xf32, #tpu.memory_space<smem>>
    memref.store %113, %arg3[%c0_50, %c0_51] : memref<1x1xf32, #tpu.memory_space<smem>>
    return
  }
}

</mosaic_0001>

<llo_original>
// kernel: tpu_custom_call.1
$region0: #{tpu_custom_call.1}
  #allocation0 [shape = 'u32[]', space=smem, size = 0x4, offset = 0x4, fixed_abs, tag = 'smem constant byte address 0x4 - core index']
  #allocation1 [shape = 'u32[144,128]{1,0:T(1,128)}', space=vmem, size = 0x12000, scoped, tag = 'internal scratch']
  %s0 = inlined_call_operand.hbm [shape: f32[16,128], index: 0, kind: input, shape index: {}]
  %s1 = inlined_call_operand.hbm [shape: bf16[4,128,128], index: 1, kind: input, shape index: {}]
  %s2 = inlined_call_operand.hbm [shape: f32[8,128], index: 2, kind: input, shape index: {}]
  %s3 = inlined_call_operand.hbm [shape: f32[1,1], index: 3, kind: output, shape index: {}]
  %s4 = sld [smem:[#allocation0]]
  $region34: #{tpu_custom_call.1} parent=0
    _
  %s6 = ssub.s32 1, %s4
  %s7 = scalar_select 0, %s6, %s4
  $region1: #{tpu_custom_call.1} parent=0
    #allocation2 [shape = 'u8[8192]{0}', space=vmem, size = 0x2000, scoped, tag = 'input window, operand 0, single buffered']
    #allocation3 [shape = 's32[1]{0}', space=sflag, size = 0x4, scoped, tag = 'scoped memory for tpu_custom_call.1']
    #allocation4 [shape = 's32[1]{0}', space=sflag, size = 0x4, scoped, tag = 'scoped memory for tpu_custom_call.1']
    #allocation5 [shape = 'u8[131072]{0}', space=vmem, size = 0x20000, scoped, tag = 'input window, operand 1, single buffered']
    #allocation6 [shape = 's32[1]{0}', space=sflag, size = 0x4, scoped, tag = 'scoped memory for tpu_custom_call.1']
    #allocation7 [shape = 'u8[4096]{0}', space=vmem, size = 0x1000, scoped, tag = 'input window, operand 2, single buffered']
    #allocation8 [shape = 'u8[512]{0}', space=smem, size = 0x200, scoped, tag = 'output window, operand 0, single buffered']
    %8 = vsyncpa [#allocation3], 0
    %9 = vsyncpa [#allocation6], 0
    %10 = vsyncpa [#allocation4], 0
    // Predicated region
    $region2: #{tpu_custom_call.1} parent=1 // pred_check
      _
    $region3: #{tpu_custom_call.1} parent=1 // pred_check_branch
      %12 = sbr.rel (0) target = $region5
    $region4: #{tpu_custom_call.1} parent=1 // pred_region
      %s14 = ssub.s32 256, 256
      %15 = vsyncadd [#allocation3], %s14
      %s16 = sshll.u32 [#allocation2], 4
      %s17 = int_to_ptr.vmem [resolvable:$true] %s16
      %22 = dma.hbm_to_vmem [thread:$0]  %s0, 256, %s17, [#allocation3], 128, 128, 8
    $region5: #{tpu_custom_call.1} parent=1 // pred_fallthru
      _
    // Predicated region
    $region6: #{tpu_custom_call.1} parent=1 // pred_check
      _
    $region7: #{tpu_custom_call.1} parent=1 // pred_check_branch
      %24 = sbr.rel (0) target = $region9
    $region8: #{tpu_custom_call.1} parent=1 // pred_region
      %s26 = ssub.s32 4096, 4096
      %27 = vsyncadd [#allocation6], %s26
      %s28 = sshll.u32 [#allocation5], 4
      %s29 = int_to_ptr.vmem [resolvable:$true] %s28
      %34 = dma.hbm_to_vmem [thread:$0]  %s1, 4096, %s29, [#allocation6], 64, 64, 4
    $region9: #{tpu_custom_call.1} parent=1 // pred_fallthru
      _
    // Predicated region
    $region10: #{tpu_custom_call.1} parent=1 // pred_check
      _
    $region11: #{tpu_custom_call.1} parent=1 // pred_check_branch
      %36 = sbr.rel (0) target = $region13
    $region12: #{tpu_custom_call.1} parent=1 // pred_region
      %s38 = ssub.s32 128, 128
      %39 = vsyncadd [#allocation6], %s38
      %s41 = sshll.u32 [#allocation7], 4
      %s42 = int_to_ptr.vmem [resolvable:$true] %s41
      %44 = dma.hbm_to_vmem [thread:$0]  %s2, 128, %s42, [#allocation6]
    $region13: #{tpu_custom_call.1} parent=1 // pred_fallthru
      _
    // Predicated region
    $region14: #{tpu_custom_call.1} parent=1 // pred_check
      _
    $region15: #{tpu_custom_call.1} parent=1 // pred_check_branch
      %46 = sbr.rel (0) target = $region17
    $region16: #{tpu_custom_call.1} parent=1 // pred_region
      %47 = dma.done [#allocation3], 256
    $region17: #{tpu_custom_call.1} parent=1 // pred_fallthru
      _
    // Predicated region
    $region18: #{tpu_custom_call.1} parent=1 // pred_check
      _
    $region19: #{tpu_custom_call.1} parent=1 // pred_check_branch
      %49 = sbr.rel (0) target = $region21
    $region20: #{tpu_custom_call.1} parent=1 // pred_region
      %50 = dma.done [#allocation6], 4096
    $region21: #{tpu_custom_call.1} parent=1 // pred_fallthru
      _
    // Predicated region
    $region22: #{tpu_custom_call.1} parent=1 // pred_check
      _
    $region23: #{tpu_custom_call.1} parent=1 // pred_check_branch
      %52 = sbr.rel (0) target = $region25
    $region24: #{tpu_custom_call.1} parent=1 // pred_region
      %53 = dma.done [#allocation6], 128
    $region25: #{tpu_custom_call.1} parent=1 // pred_fallthru
      _
    %v55 = vld [vmem:[#allocation2] sm:$0xff]
    %v56 = vld [vmem:[#allocation2 + $0x8] sm:$0xff]
    %v57 = vpack.c.bf16 %v56, %v55
    %v58 = vld [vmem:[#allocation5] sm:$0xf]
    %v59 = vld [vmem:[#allocation5 + $0x4] sm:$0xf]
    %v60 = vld [vmem:[#allocation5 + $0x8] sm:$0xf]
    %v61 = vld [vmem:[#allocation5 + $0xc] sm:$0xf]
    %v62 = vld [vmem:[#allocation5 + $0x10] sm:$0xf]
    %v63 = vld [vmem:[#allocation5 + $0x14] sm:$0xf]
    %v64 = vld [vmem:[#allocation5 + $0x18] sm:$0xf]
    %v65 = vld [vmem:[#allocation5 + $0x1c] sm:$0xf]
    %v66 = vld [vmem:[#allocation5 + $0x20] sm:$0xf]
    %v67 = vld [vmem:[#allocation5 + $0x24] sm:$0xf]
    %v68 = vld [vmem:[#allocation5 + $0x28] sm:$0xf]
    %v69 = vld [vmem:[#allocation5 + $0x2c] sm:$0xf]
    %v70 = vld [vmem:[#allocation5 + $0x30] sm:$0xf]
    %v71 = vld [vmem:[#allocation5 + $0x34] sm:$0xf]
    %v72 = vld [vmem:[#allocation5 + $0x38] sm:$0xf]
    %v73 = vld [vmem:[#allocation5 + $0x3c] sm:$0xf]
    %v90 = vunpack.c.l.b16 %v58
    %v91 = vunpack.c.l.b16 %v59
    %v92 = vunpack.c.l.b16 %v60
    %v93 = vunpack.c.l.b16 %v61
    %v94 = vunpack.c.l.b16 %v62
    %v95 = vunpack.c.l.b16 %v63
    %v96 = vunpack.c.l.b16 %v64
    %v97 = vunpack.c.l.b16 %v65
    %v98 = vunpack.c.l.b16 %v66
    %v99 = vunpack.c.l.b16 %v67
    %v100 = vunpack.c.l.b16 %v68
    %v101 = vunpack.c.l.b16 %v69
    %v102 = vunpack.c.l.b16 %v70
    %v103 = vunpack.c.l.b16 %v71
    %v104 = vunpack.c.l.b16 %v72
    %v105 = vunpack.c.l.b16 %v73
    %v106 = vpack.c.b16 %v91, %v90
    %v107 = vpack.c.b16 %v93, %v92
    %v108 = vpack.c.b16 %v95, %v94
    %v109 = vpack.c.b16 %v97, %v96
    %v110 = vpack.c.b16 %v99, %v98
    %v111 = vpack.c.b16 %v101, %v100
    %v112 = vpack.c.b16 %v103, %v102
    %v113 = vpack.c.b16 %v105, %v104
    %122 = vmatprep.subr.bf16.mxu0 0
    %123 = vmatpush1.bf16.msra.mxu0 %v106
    %124 = vmatprep.subr.bf16.mxu0 0
    %125 = vmatpush1.bf16.msra.mxu0 %v107
    %126 = vmatprep.subr.bf16.mxu0 0
    %127 = vmatpush1.bf16.msra.mxu0 %v108
    %128 = vmatprep.subr.bf16.mxu0 0
    %129 = vmatpush1.bf16.msra.mxu0 %v109
    %130 = vmatprep.subr.bf16.mxu0 0
    %131 = vmatpush1.bf16.msra.mxu0 %v110
    %132 = vmatprep.subr.bf16.mxu0 0
    %133 = vmatpush1.bf16.msra.mxu0 %v111
    %134 = vmatprep.subr.bf16.mxu0 0
    %135 = vmatpush1.bf16.msra.mxu0 %v112
    %136 = vmatprep.subr.bf16.mxu0 0
    %137 = vmatpush1.bf16.msra.mxu0 %v113
    %138 = vmatprep.subr.bf16.mxu0 0
    %139 = vmatpush1.bf16.msra.mxu0 0
    %140 = vmatprep.subr.bf16.mxu0 0
    %141 = vmatpush1.bf16.msra.mxu0 0
    %142 = vmatprep.subr.bf16.mxu0 0
    %143 = vmatpush1.bf16.msra.mxu0 0
    %144 = vmatprep.subr.bf16.mxu0 0
    %145 = vmatpush1.bf16.msra.mxu0 0
    %146 = vmatprep.subr.bf16.mxu0 0
    %147 = vmatpush1.bf16.msra.mxu0 0
    %148 = vmatprep.subr.bf16.mxu0 0
    %149 = vmatpush1.bf16.msra.mxu0 0
    %150 = vmatprep.subr.bf16.mxu0 0
    %151 = vmatpush1.bf16.msra.mxu0 0
    %152 = vmatprep.subr.bf16.mxu0 0
    %153 = vmatpush1.bf16.msra.mxu0 0
    %154 = vmatprep.mubr.bf16.mxu0 0
    %155 = vmatmul.mubr.bf16.gmra.mrb[0].mxu0 %v57
    %v156 = vpop.f32.mrb[0].mxu0
    %v157 = vadd.f32 0.0, %v156
    %v158 = vpop.f32.mrb[0].mxu0
    %v159 = vpop.f32.mrb[0].mxu0
    %v160 = vadd.f32 0.0, %v159
    %v161 = vpop.f32.mrb[0].mxu0
    %162 = vdwg.mxu0
    %v163 = vadd.f32 %v157, %v160
    %v164 = vrot.slane %v163, 4
    %v165 = vadd.f32 %v163, %v164
    %v166 = vrot.slane %v165, 2
    %v167 = vadd.f32 %v165, %v166
    %v168 = vrot.slane %v167, 1
    %v169 = vadd.f32 %v167, %v168
    %v170 = vrcp.pop 16.0
    %v171 = vmul.f32 %v169, %v170
    %v172 = vsub.f32 %v157, %v171
    %v173 = vsub.f32 %v160, %v171
    %v174 = vmul.f32 %v172, %v172
    %v175 = vmul.f32 %v173, %v173
    %v176 = vadd.f32 %v174, %v175
    %v177 = vrot.slane %v176, 4
    %v178 = vadd.f32 %v176, %v177
    %v179 = vrot.slane %v178, 2
    %v180 = vadd.f32 %v178, %v179
    %v181 = vrot.slane %v180, 1
    %v182 = vadd.f32 %v180, %v181
    %v183 = vmul.f32 %v182, %v170
    %v184 = vld [vmem:[#allocation7] sm:$0x1]
    %v185 = vld [vmem:[#allocation7 + $0x1] sm:$0x1]
    %v186 = vadd.f32 %v183, 1e-05
    %v187 = vrsqrt.pop %v186
    %v188 = vmul.f32 %v187, %v184
    %v189 = vlaneseq
    %v190 = vshrl.u32 %v189, 7
    %v191 = vsub.s32 0, %v190
    %v192 = vrot.slane %v188, %v191
    %v193 = vmul.f32 %v172, %v192
    %v194 = vmul.f32 %v173, %v192
    %v195 = vlaneseq
    %v196 = vshrl.u32 %v195, 7
    %v197 = vsub.s32 0, %v196
    %v198 = vrot.slane %v185, %v197
    %v199 = vadd.f32 %v193, %v198
    %v200 = vadd.f32 %v194, %v198
    %v201 = vmax.f32 %v199, 0.0
    %v202 = vmax.f32 %v200, 0.0
    %v203 = vpack.c.bf16 %v202, %v201
    %s204 = scalar_lea.vmem [#allocation5], 64
    %v205 = vld [vmem:[%s204] sm:$0xf]
    %v206 = vld [vmem:[%s204 + $0x4] sm:$0xf]
    %v207 = vld [vmem:[%s204 + $0x8] sm:$0xf]
    %v208 = vld [vmem:[%s204 + $0xc] sm:$0xf]
    %v209 = vld [vmem:[%s204 + $0x10] sm:$0xf]
    %v210 = vld [vmem:[%s204 + $0x14] sm:$0xf]
    %v211 = vld [vmem:[%s204 + $0x18] sm:$0xf]
    %v212 = vld [vmem:[%s204 + $0x1c] sm:$0xf]
    %v213 = vld [vmem:[%s204 + $0x20] sm:$0xf]
    %v214 = vld [vmem:[%s204 + $0x24] sm:$0xf]
    %v215 = vld [vmem:[%s204 + $0x28] sm:$0xf]
    %v216 = vld [vmem:[%s204 + $0x2c] sm:$0xf]
    %v217 = vld [vmem:[%s204 + $0x30] sm:$0xf]
    %v218 = vld [vmem:[%s204 + $0x34] sm:$0xf]
    %v219 = vld [vmem:[%s204 + $0x38] sm:$0xf]
    %v220 = vld [vmem:[%s204 + $0x3c] sm:$0xf]
    %v237 = vunpack.c.l.b16 %v205
    %v238 = vunpack.c.l.b16 %v206
    %v239 = vunpack.c.l.b16 %v207
    %v240 = vunpack.c.l.b16 %v208
    %v241 = vunpack.c.l.b16 %v209
    %v242 = vunpack.c.l.b16 %v210
    %v243 = vunpack.c.l.b16 %v211
    %v244 = vunpack.c.l.b16 %v212
    %v245 = vunpack.c.l.b16 %v213
    %v246 = vunpack.c.l.b16 %v214
    %v247 = vunpack.c.l.b16 %v215
    %v248 = vunpack.c.l.b16 %v216
    %v249 = vunpack.c.l.b16 %v217
    %v250 = vunpack.c.l.b16 %v218
    %v251 = vunpack.c.l.b16 %v219
    %v252 = vunpack.c.l.b16 %v220
    %v253 = vpack.c.b16 %v238, %v237
    %v254 = vpack.c.b16 %v240, %v239
    %v255 = vpack.c.b16 %v242, %v241
    %v256 = vpack.c.b16 %v244, %v243
    %v257 = vpack.c.b16 %v246, %v245
    %v258 = vpack.c.b16 %v248, %v247
    %v259 = vpack.c.b16 %v250, %v249
    %v260 = vpack.c.b16 %v252, %v251
    %269 = vmatprep.subr.bf16.mxu0 0
    %270 = vmatpush1.bf16.msra.mxu0 %v253
    %271 = vmatprep.subr.bf16.mxu0 0
    %272 = vmatpush1.bf16.msra.mxu0 %v254
    %273 = vmatprep.subr.bf16.mxu0 0
    %274 = vmatpush1.bf16.msra.mxu0 %v255
    %275 = vmatprep.subr.bf16.mxu0 0
    %276 = vmatpush1.bf16.msra.mxu0 %v256
    %277 = vmatprep.subr.bf16.mxu0 0
    %278 = vmatpush1.bf16.msra.mxu0 %v257
    %279 = vmatprep.subr.bf16.mxu0 0
    %280 = vmatpush1.bf16.msra.mxu0 %v258
    %281 = vmatprep.subr.bf16.mxu0 0
    %282 = vmatpush1.bf16.msra.mxu0 %v259
    %283 = vmatprep.subr.bf16.mxu0 0
    %284 = vmatpush1.bf16.msra.mxu0 %v260
    %285 = vmatprep.subr.bf16.mxu0 0
    %286 = vmatpush1.bf16.msra.mxu0 0
    %287 = vmatprep.subr.bf16.mxu0 0
    %288 = vmatpush1.bf16.msra.mxu0 0
    %289 = vmatprep.subr.bf16.mxu0 0
    %290 = vmatpush1.bf16.msra.mxu0 0
    %291 = vmatprep.subr.bf16.mxu0 0
    %292 = vmatpush1.bf16.msra.mxu0 0
    %293 = vmatprep.subr.bf16.mxu0 0
    %294 = vmatpush1.bf16.msra.mxu0 0
    %295 = vmatprep.subr.bf16.mxu0 0
    %296 = vmatpush1.bf16.msra.mxu0 0
    %297 = vmatprep.subr.bf16.mxu0 0
    %298 = vmatpush1.bf16.msra.mxu0 0
    %299 = vmatprep.subr.bf16.mxu0 0
    %300 = vmatpush1.bf16.msra.mxu0 0
    %301 = vmatprep.mubr.bf16.mxu0 0
    %302 = vmatmul.mubr.bf16.gmra.mrb[0].mxu0 %v203
    %v303 = vpop.f32.mrb[0].mxu0
    %v304 = vadd.f32 0.0, %v303
    %v305 = vpop.f32.mrb[0].mxu0
    %v306 = vpop.f32.mrb[0].mxu0
    %v307 = vadd.f32 0.0, %v306
    %v308 = vpop.f32.mrb[0].mxu0
    %309 = vdwg.mxu0
    %v310 = vadd.f32 %v304, %v307
    %v311 = vrot.slane %v310, 4
    %v312 = vadd.f32 %v310, %v311
    %v313 = vrot.slane %v312, 2
    %v314 = vadd.f32 %v312, %v313
    %v315 = vrot.slane %v314, 1
    %v316 = vadd.f32 %v314, %v315
    %v317 = vmul.f32 %v316, %v170
    %v318 = vsub.f32 %v304, %v317
    %v319 = vsub.f32 %v307, %v317
    %v320 = vmul.f32 %v318, %v318
    %v321 = vmul.f32 %v319, %v319
    %v322 = vadd.f32 %v320, %v321
    %v323 = vrot.slane %v322, 4
    %v324 = vadd.f32 %v322, %v323
    %v325 = vrot.slane %v324, 2
    %v326 = vadd.f32 %v324, %v325
    %v327 = vrot.slane %v326, 1
    %v328 = vadd.f32 %v326, %v327
    %v329 = vmul.f32 %v328, %v170
    %v330 = vld [vmem:[#allocation7 + $0x2] sm:$0x1]
    %v331 = vld [vmem:[#allocation7 + $0x3] sm:$0x1]
    %v332 = vadd.f32 %v329, 1e-05
    %v333 = vrsqrt.pop %v332
    %v334 = vmul.f32 %v333, %v330
    %v335 = vlaneseq
    %v336 = vshrl.u32 %v335, 7
    %v337 = vsub.s32 0, %v336
    %v338 = vrot.slane %v334, %v337
    %v339 = vmul.f32 %v318, %v338
    %v340 = vmul.f32 %v319, %v338
    %v341 = vlaneseq
    %v342 = vshrl.u32 %v341, 7
    %v343 = vsub.s32 0, %v342
    %v344 = vrot.slane %v331, %v343
    %v345 = vadd.f32 %v339, %v344
    %v346 = vadd.f32 %v340, %v344
    %v347 = vpack.c.bf16 %v346, %v345
    %s348 = scalar_lea.vmem [#allocation5], 128
    %v349 = vld [vmem:[%s348] sm:$0xf]
    %v350 = vld [vmem:[%s348 + $0x4] sm:$0xf]
    %v351 = vld [vmem:[%s348 + $0x8] sm:$0xf]
    %v352 = vld [vmem:[%s348 + $0xc] sm:$0xf]
    %v353 = vld [vmem:[%s348 + $0x10] sm:$0xf]
    %v354 = vld [vmem:[%s348 + $0x14] sm:$0xf]
    %v355 = vld [vmem:[%s348 + $0x18] sm:$0xf]
    %v356 = vld [vmem:[%s348 + $0x1c] sm:$0xf]
    %v357 = vld [vmem:[%s348 + $0x20] sm:$0xf]
    %v358 = vld [vmem:[%s348 + $0x24] sm:$0xf]
    %v359 = vld [vmem:[%s348 + $0x28] sm:$0xf]
    %v360 = vld [vmem:[%s348 + $0x2c] sm:$0xf]
    %v361 = vld [vmem:[%s348 + $0x30] sm:$0xf]
    %v362 = vld [vmem:[%s348 + $0x34] sm:$0xf]
    %v363 = vld [vmem:[%s348 + $0x38] sm:$0xf]
    %v364 = vld [vmem:[%s348 + $0x3c] sm:$0xf]
    %v381 = vunpack.c.l.b16 %v349
    %v382 = vunpack.c.l.b16 %v350
    %v383 = vunpack.c.l.b16 %v351
    %v384 = vunpack.c.l.b16 %v352
    %v385 = vunpack.c.l.b16 %v353
    %v386 = vunpack.c.l.b16 %v354
    %v387 = vunpack.c.l.b16 %v355
    %v388 = vunpack.c.l.b16 %v356
    %v389 = vunpack.c.l.b16 %v357
    %v390 = vunpack.c.l.b16 %v358
    %v391 = vunpack.c.l.b16 %v359
    %v392 = vunpack.c.l.b16 %v360
    %v393 = vunpack.c.l.b16 %v361
    %v394 = vunpack.c.l.b16 %v362
    %v395 = vunpack.c.l.b16 %v363
    %v396 = vunpack.c.l.b16 %v364
    %v397 = vpack.c.b16 %v382, %v381
    %v398 = vpack.c.b16 %v384, %v383
    %v399 = vpack.c.b16 %v386, %v385
    %v400 = vpack.c.b16 %v388, %v387
    %v401 = vpack.c.b16 %v390, %v389
    %v402 = vpack.c.b16 %v392, %v391
    %v403 = vpack.c.b16 %v394, %v393
    %v404 = vpack.c.b16 %v396, %v395
    %413 = vmatprep.subr.bf16.mxu0 0
    %414 = vmatpush1.bf16.msra.mxu0 %v397
    %415 = vmatprep.subr.bf16.mxu0 0
    %416 = vmatpush1.bf16.msra.mxu0 %v398
    %417 = vmatprep.subr.bf16.mxu0 0
    %418 = vmatpush1.bf16.msra.mxu0 %v399
    %419 = vmatprep.subr.bf16.mxu0 0
    %420 = vmatpush1.bf16.msra.mxu0 %v400
    %421 = vmatprep.subr.bf16.mxu0 0
    %422 = vmatpush1.bf16.msra.mxu0 %v401
    %423 = vmatprep.subr.bf16.mxu0 0
    %424 = vmatpush1.bf16.msra.mxu0 %v402
    %425 = vmatprep.subr.bf16.mxu0 0
    %426 = vmatpush1.bf16.msra.mxu0 %v403
    %427 = vmatprep.subr.bf16.mxu0 0
    %428 = vmatpush1.bf16.msra.mxu0 %v404
    %429 = vmatprep.subr.bf16.mxu0 0
    %430 = vmatpush1.bf16.msra.mxu0 0
    %431 = vmatprep.subr.bf16.mxu0 0
    %432 = vmatpush1.bf16.msra.mxu0 0
    %433 = vmatprep.subr.bf16.mxu0 0
    %434 = vmatpush1.bf16.msra.mxu0 0
    %435 = vmatprep.subr.bf16.mxu0 0
    %436 = vmatpush1.bf16.msra.mxu0 0
    %437 = vmatprep.subr.bf16.mxu0 0
    %438 = vmatpush1.bf16.msra.mxu0 0
    %439 = vmatprep.subr.bf16.mxu0 0
    %440 = vmatpush1.bf16.msra.mxu0 0
    %441 = vmatprep.subr.bf16.mxu0 0
    %442 = vmatpush1.bf16.msra.mxu0 0
    %443 = vmatprep.subr.bf16.mxu0 0
    %444 = vmatpush1.bf16.msra.mxu0 0
    %445 = vmatprep.mubr.bf16.mxu0 0
    %446 = vmatmul.mubr.bf16.gmra.mrb[0].mxu0 %v347
    %v447 = vpop.f32.mrb[0].mxu0
    %v448 = vadd.f32 0.0, %v447
    %v449 = vpop.f32.mrb[0].mxu0
    %v450 = vpop.f32.mrb[0].mxu0
    %v451 = vadd.f32 0.0, %v450
    %v452 = vpop.f32.mrb[0].mxu0
    %453 = vdwg.mxu0
    %v454 = vadd.f32 %v448, %v451
    %v455 = vrot.slane %v454, 4
    %v456 = vadd.f32 %v454, %v455
    %v457 = vrot.slane %v456, 2
    %v458 = vadd.f32 %v456, %v457
    %v459 = vrot.slane %v458, 1
    %v460 = vadd.f32 %v458, %v459
    %v461 = vmul.f32 %v460, %v170
    %v462 = vsub.f32 %v448, %v461
    %v463 = vsub.f32 %v451, %v461
    %v464 = vmul.f32 %v462, %v462
    %v465 = vmul.f32 %v463, %v463
    %v466 = vadd.f32 %v464, %v465
    %v467 = vrot.slane %v466, 4
    %v468 = vadd.f32 %v466, %v467
    %v469 = vrot.slane %v468, 2
    %v470 = vadd.f32 %v468, %v469
    %v471 = vrot.slane %v470, 1
    %v472 = vadd.f32 %v470, %v471
    %v473 = vmul.f32 %v472, %v170
    %v474 = vld [vmem:[#allocation7 + $0x4] sm:$0x1]
    %v475 = vld [vmem:[#allocation7 + $0x5] sm:$0x1]
    %v476 = vadd.f32 %v473, 1e-05
    %v477 = vrsqrt.pop %v476
    %v478 = vmul.f32 %v477, %v474
    %v479 = vlaneseq
    %v480 = vshrl.u32 %v479, 7
    %v481 = vsub.s32 0, %v480
    %v482 = vrot.slane %v478, %v481
    %v483 = vmul.f32 %v462, %v482
    %v484 = vmul.f32 %v463, %v482
    %v485 = vlaneseq
    %v486 = vshrl.u32 %v485, 7
    %v487 = vsub.s32 0, %v486
    %v488 = vrot.slane %v475, %v487
    %v489 = vadd.f32 %v483, %v488
    %v490 = vadd.f32 %v484, %v488
    %v491 = vmax.f32 %v489, 0.0
    %v492 = vmax.f32 %v490, 0.0
    %v493 = vpack.c.bf16 %v492, %v491
    %s494 = scalar_lea.vmem [#allocation5], 192
    %v495 = vld [vmem:[%s494] sm:$0xf]
    %v496 = vld [vmem:[%s494 + $0x4] sm:$0xf]
    %v497 = vld [vmem:[%s494 + $0x8] sm:$0xf]
    %v498 = vld [vmem:[%s494 + $0xc] sm:$0xf]
    %v499 = vld [vmem:[%s494 + $0x10] sm:$0xf]
    %v500 = vld [vmem:[%s494 + $0x14] sm:$0xf]
    %v501 = vld [vmem:[%s494 + $0x18] sm:$0xf]
    %v502 = vld [vmem:[%s494 + $0x1c] sm:$0xf]
    %v503 = vld [vmem:[%s494 + $0x20] sm:$0xf]
    %v504 = vld [vmem:[%s494 + $0x24] sm:$0xf]
    %v505 = vld [vmem:[%s494 + $0x28] sm:$0xf]
    %v506 = vld [vmem:[%s494 + $0x2c] sm:$0xf]
    %v507 = vld [vmem:[%s494 + $0x30] sm:$0xf]
    %v508 = vld [vmem:[%s494 + $0x34] sm:$0xf]
    %v509 = vld [vmem:[%s494 + $0x38] sm:$0xf]
    %v510 = vld [vmem:[%s494 + $0x3c] sm:$0xf]
    %v527 = vunpack.c.l.b16 %v495
    %v528 = vunpack.c.l.b16 %v496
    %v529 = vunpack.c.l.b16 %v497
    %v530 = vunpack.c.l.b16 %v498
    %v531 = vunpack.c.l.b16 %v499
    %v532 = vunpack.c.l.b16 %v500
    %v533 = vunpack.c.l.b16 %v501
    %v534 = vunpack.c.l.b16 %v502
    %v535 = vunpack.c.l.b16 %v503
    %v536 = vunpack.c.l.b16 %v504
    %v537 = vunpack.c.l.b16 %v505
    %v538 = vunpack.c.l.b16 %v506
    %v539 = vunpack.c.l.b16 %v507
    %v540 = vunpack.c.l.b16 %v508
    %v541 = vunpack.c.l.b16 %v509
    %v542 = vunpack.c.l.b16 %v510
    %v543 = vpack.c.b16 %v528, %v527
    %v544 = vpack.c.b16 %v530, %v529
    %v545 = vpack.c.b16 %v532, %v531
    %v546 = vpack.c.b16 %v534, %v533
    %v547 = vpack.c.b16 %v536, %v535
    %v548 = vpack.c.b16 %v538, %v537
    %v549 = vpack.c.b16 %v540, %v539
    %v550 = vpack.c.b16 %v542, %v541
    %559 = vmatprep.subr.bf16.mxu0 0
    %560 = vmatpush1.bf16.msra.mxu0 %v543
    %561 = vmatprep.subr.bf16.mxu0 0
    %562 = vmatpush1.bf16.msra.mxu0 %v544
    %563 = vmatprep.subr.bf16.mxu0 0
    %564 = vmatpush1.bf16.msra.mxu0 %v545
    %565 = vmatprep.subr.bf16.mxu0 0
    %566 = vmatpush1.bf16.msra.mxu0 %v546
    %567 = vmatprep.subr.bf16.mxu0 0
    %568 = vmatpush1.bf16.msra.mxu0 %v547
    %569 = vmatprep.subr.bf16.mxu0 0
    %570 = vmatpush1.bf16.msra.mxu0 %v548
    %571 = vmatprep.subr.bf16.mxu0 0
    %572 = vmatpush1.bf16.msra.mxu0 %v549
    %573 = vmatprep.subr.bf16.mxu0 0
    %574 = vmatpush1.bf16.msra.mxu0 %v550
    %575 = vmatprep.subr.bf16.mxu0 0
    %576 = vmatpush1.bf16.msra.mxu0 0
    %577 = vmatprep.subr.bf16.mxu0 0
    %578 = vmatpush1.bf16.msra.mxu0 0
    %579 = vmatprep.subr.bf16.mxu0 0
    %580 = vmatpush1.bf16.msra.mxu0 0
    %581 = vmatprep.subr.bf16.mxu0 0
    %582 = vmatpush1.bf16.msra.mxu0 0
    %583 = vmatprep.subr.bf16.mxu0 0
    %584 = vmatpush1.bf16.msra.mxu0 0
    %585 = vmatprep.subr.bf16.mxu0 0
    %586 = vmatpush1.bf16.msra.mxu0 0
    %587 = vmatprep.subr.bf16.mxu0 0
    %588 = vmatpush1.bf16.msra.mxu0 0
    %589 = vmatprep.subr.bf16.mxu0 0
    %590 = vmatpush1.bf16.msra.mxu0 0
    %591 = vmatprep.mubr.bf16.mxu0 0
    %592 = vmatmul.mubr.bf16.gmra.mrb[0].mxu0 %v493
    %v593 = vpop.f32.mrb[0].mxu0
    %v594 = vadd.f32 0.0, %v593
    %v595 = vpop.f32.mrb[0].mxu0
    %v596 = vpop.f32.mrb[0].mxu0
    %v597 = vadd.f32 0.0, %v596
    %v598 = vpop.f32.mrb[0].mxu0
    %599 = vdwg.mxu0
    %v600 = vadd.f32 %v594, %v597
    %v601 = vrot.slane %v600, 4
    %v602 = vadd.f32 %v600, %v601
    %v603 = vrot.slane %v602, 2
    %v604 = vadd.f32 %v602, %v603
    %v605 = vrot.slane %v604, 1
    %v606 = vadd.f32 %v604, %v605
    %v607 = vmul.f32 %v606, %v170
    %v608 = vsub.f32 %v594, %v607
    %v609 = vsub.f32 %v597, %v607
    %v610 = vmul.f32 %v608, %v608
    %v611 = vmul.f32 %v609, %v609
    %v612 = vadd.f32 %v610, %v611
    %v613 = vrot.slane %v612, 4
    %v614 = vadd.f32 %v612, %v613
    %v615 = vrot.slane %v614, 2
    %v616 = vadd.f32 %v614, %v615
    %v617 = vrot.slane %v616, 1
    %v618 = vadd.f32 %v616, %v617
    %v619 = vmul.f32 %v618, %v170
    %v620 = vld [vmem:[#allocation7 + $0x6] sm:$0x1]
    %v621 = vld [vmem:[#allocation7 + $0x7] sm:$0x1]
    %v622 = vadd.f32 %v619, 1e-05
    %v623 = vrsqrt.pop %v622
    %v624 = vmul.f32 %v623, %v620
    %v625 = vlaneseq
    %v626 = vshrl.u32 %v625, 7
    %v627 = vsub.s32 0, %v626
    %v628 = vrot.slane %v624, %v627
    %v629 = vmul.f32 %v608, %v628
    %v630 = vmul.f32 %v609, %v628
    %v631 = vlaneseq
    %v632 = vshrl.u32 %v631, 7
    %v633 = vsub.s32 0, %v632
    %v634 = vrot.slane %v621, %v633
    %v635 = vadd.f32 %v629, %v634
    %v636 = vadd.f32 %v630, %v634
    %v637 = vsub.f32 %v635, %v55
    %v638 = vsub.f32 %v636, %v56
    %v639 = vmul.f32 %v637, %v637
    %v640 = vmul.f32 %v638, %v638
    %v641 = vadd.f32 %v639, %v640
    %v642 = vrot.slane %v641, 4
    %v643 = vadd.f32 %v641, %v642
    %v644 = vrot.slane %v643, 2
    %v645 = vadd.f32 %v643, %v644
    %v646 = vrot.slane %v645, 1
    %v647 = vadd.f32 %v645, %v646
    %vm648 = vcmask 1040384
    %v649 = vsel %vm648, %v647, 0.0
    %650 = vadd.xlane.f32.xlu0 %v649
    %v651 = vpop.xlane.xlu0 %650
    %v652 = vrot.slane %v651, 4
    %v653 = vadd.f32 %v651, %v652
    %v654 = vrot.slane %v653, 2
    %v655 = vadd.f32 %v653, %v654
    %v656 = vrot.slane %v655, 1
    %v657 = vadd.f32 %v655, %v656
    %s658 = vtos %v657
    %s659 = smul.f32 %s658, 0.03125
    %s660 = scalar_lea.smem [#allocation8], 0
    %661 = sst [smem:[%s660]] %s659
    // Predicated region
    $region26: #{tpu_custom_call.1} parent=1 // pred_check
      _
    $region27: #{tpu_custom_call.1} parent=1 // pred_check_branch
      %663 = sbr.rel (0) target = $region29
    $region28: #{tpu_custom_call.1} parent=1 // pred_region
      %s665 = ssub.s32 16, 16
      %666 = vsyncadd [#allocation4], %s665
      %669 = dma.smem_to_hbm [#allocation8], 16, %s3, [#allocation4]
    $region29: #{tpu_custom_call.1} parent=1 // pred_fallthru
      _
    // Predicated region
    $region30: #{tpu_custom_call.1} parent=1 // pred_check
      _
    $region31: #{tpu_custom_call.1} parent=1 // pred_check_branch
      %671 = sbr.rel (0) target = $region33
    $region32: #{tpu_custom_call.1} parent=1 // pred_region
      %672 = dma.done [#allocation4], 16
    $region33: #{tpu_custom_call.1} parent=1 // pred_fallthru
      _
    %673 = sfence
    %674 = vsyncpa [#allocation3], 1
    %675 = vsyncpa [#allocation6], 1
    %676 = vsyncpa [#allocation4], 1

</llo_original>
